<compile_context>
chip_gen: v7x
topology: tpu7x:2x2x1
jax: 0.10.0
libtpu: 0.0.40
codegen_flags: <defaults>
</compile_context>

<pallas_src>
import functools

import jax
import jax.numpy as jnp
from jax import lax
from jax.experimental import pallas as pl
from jax.experimental.pallas import tpu as pltpu

_NEG_SLOPE = 0.01  # nn.LeakyReLU default negative_slope


def _dist_sim_kernel(vd_t_ref, vd_rows_ref, ed_last_ref,
                     w1_ref, t1_ref, w2_ref, t2_ref, w3_ref, b3_ref,
                     out_ref, *, metric, n_valid):
    f32 = jnp.float32
    bf16 = jnp.bfloat16
    T = out_ref.shape[1]          # rows per tile (multiple of 8)
    Np = out_ref.shape[2]         # padded number of points (multiple of 128)

    # Tile-invariant loads (hoisted out of the row loop).
    vd_all = vd_t_ref[0]                                   # (D, Np), channel-major
    vd_cols = jnp.transpose(vd_rows_ref[0], (1, 0))        # (D, T), this tile's rows
    w1b = w1_ref[...].astype(bf16)                         # (2C, D)   BN scale folded
    w2b = w2_ref[...].astype(bf16)                         # (C, 2C)   BN scale folded
    t1 = t1_ref[...]                                       # (2C, 1)
    t2 = t2_ref[...]                                       # (C, 1)
    w3 = w3_ref[...]                                       # (C, 1)
    b3 = b3_ref[...]                                       # (1, 1)
    lane_t = lax.broadcasted_iota(jnp.int32, (1, T), 1)

    # ---- Phase 1: per-row 1x1-conv stack -> raw logits ---------------------
    # Rows are written into the output block (reused as the logits slab).
    @pl.loop(0, T)
    def _(r):
        onehot = jnp.where(lane_t == r, 1.0, 0.0).astype(f32)      # (1, T)
        vd_i = jnp.sum(vd_cols * onehot, axis=-1, keepdims=True)   # (D, 1)
        diff = vd_i - vd_all                                       # (D, Np)
        sim = diff * diff if metric == 'l2' else jnp.abs(diff)

        # conv1 (1x1, no bias, BN folded) + LeakyReLU
        h = jnp.dot(w1b, sim.astype(bf16), preferred_element_type=f32) + t1
        h = jnp.maximum(h, _NEG_SLOPE * h)
        # conv2 (1x1, no bias, BN folded) + LeakyReLU
        h = jnp.dot(w2b, h.astype(bf16), preferred_element_type=f32) + t2
        h = jnp.maximum(h, _NEG_SLOPE * h)
        # conv3 (1x1, bias) -> 1 channel (exact f32 sublane reduce)
        logits = jnp.sum(h * w3, axis=0, keepdims=True) + b3       # (1, Np)
        out_ref[0, pl.ds(r, 1), :] = logits

    # ---- Phase 2: batched sigmoid + normalizations on the (T, Np) tile -----
    ed_sig = jax.nn.sigmoid(out_ref[0, :, :])                      # (T, Np)
    ed_last = ed_last_ref[0]                                       # (T, Np)
    row0 = pl.program_id(1) * T
    gi = row0 + lax.broadcasted_iota(jnp.int32, (T, Np), 0)        # global row index
    cj = lax.broadcasted_iota(jnp.int32, (T, Np), 1)               # column index
    diag = jnp.where(gi == cj, 1.0, 0.0).astype(f32)

    ed_last_m = ed_last * (1.0 - diag)
    ed_sum = jnp.sum(ed_last_m, axis=-1, keepdims=True)            # (T, 1)
    prod = ed_sig * ed_last_m
    # F.normalize(p=1, dim=-1): x / clamp_min(sum|x|, 1e-12)
    l1 = jnp.maximum(jnp.sum(jnp.abs(prod), axis=-1, keepdims=True), 1e-12)
    ed = prod / l1 * ed_sum + diag + 1e-6
    if n_valid < Np:
        # Zero padded lanes so they do not pollute the final row-sum.
        valid = jnp.where(cj < n_valid, 1.0, 0.0).astype(f32)
        ed = ed * valid
    ed = ed / jnp.sum(ed, axis=-1, keepdims=True)
    out_ref[0, :, :] = ed


def _round_up(x, m):
    return (x + m - 1) // m * m


def distribution_similarity(vd_curr_gen, ed_last_gen, params,
                            distance_metric='l2'):
    """vd_curr_gen: (B, N, D) f32; ed_last_gen: (B, N, N) f32 -> (B, N, N)."""
    B, N, D = vd_curr_gen.shape
    w1, s1, t1, w2, s2, t2, w3, b3 = params
    C2, C = w1.shape[0], w2.shape[0]

    # Fold eval-mode BatchNorm scale into the conv weights (host side).
    w1f = (w1 * s1).astype(jnp.float32)
    w2f = (w2 * s2).astype(jnp.float32)

    # Column axis padded to a multiple of 128 (lane-dense layout).
    Np = max(_round_up(N, 128), 128)

    # Row-tile size: multiple of 8, as big as possible while keeping the
    # double-buffered f32 blocks comfortably inside scoped VMEM.
    T = min(128, _round_up(N, 8))

    def vmem_est(t):  # bytes: 2x buffered f32 blocks (ed_last, out, vd_t, vd_rows)
        return 4 * 2 * (2 * t * Np + D * Np + t * D)

    while T > 8 and vmem_est(T) > 20 * 1024 * 1024:
        T = max(8, _round_up(T // 2, 8))

    # Row axis only padded to a multiple of the row tile (<= Np).
    Nr = _round_up(N, T)

    vd_np = jnp.pad(vd_curr_gen, ((0, 0), (0, Np - N), (0, 0)))       # (B, Np, D)
    vd_t = jnp.transpose(vd_np, (0, 2, 1))                            # (B, D, Np)
    vd_rows = vd_np[:, :Nr, :]                                        # (B, Nr, D)
    ed_pad = jnp.pad(ed_last_gen, ((0, 0), (0, Nr - N), (0, Np - N)))  # (B, Nr, Np)

    kernel = functools.partial(_dist_sim_kernel,
                               metric=distance_metric, n_valid=N)

    def wspec(shape):
        return pl.BlockSpec(shape, lambda b, it: (0,) * len(shape))

    grid_spec = pltpu.PrefetchScalarGridSpec(
        num_scalar_prefetch=0,
        grid=(B, Nr // T),
        in_specs=[
            pl.BlockSpec((1, D, Np), lambda b, it: (b, 0, 0)),    # vd_t: all points
            pl.BlockSpec((1, T, D), lambda b, it: (b, it, 0)),    # vd rows of tile
            pl.BlockSpec((1, T, Np), lambda b, it: (b, it, 0)),   # ed_last rows of tile
            wspec((C2, D)), wspec((C2, 1)),                       # w1 (folded), t1
            wspec((C, C2)), wspec((C, 1)),                        # w2 (folded), t2
            wspec((C, 1)), wspec((1, 1)),                         # w3, b3
        ],
        out_specs=pl.BlockSpec((1, T, Np), lambda b, it: (b, it, 0)),
    )

    out = pl.pallas_call(
        kernel,
        out_shape=jax.ShapeDtypeStruct((B, Nr, Np), jnp.float32),
        grid_spec=grid_spec,
        compiler_params=pltpu.CompilerParams(
            dimension_semantics=("parallel", "parallel"),
            vmem_limit_bytes=40 * 1024 * 1024),
    )(vd_t, vd_rows, ed_pad, w1f, t1, w2f, t2, w3, b3)

    return out[:, :N, :N]


def init_params(key, in_c, base_c):
    """Deterministic parameters: 1x1 conv weights + folded eval-mode BatchNorm."""
    c2 = base_c * 2
    ks = jax.random.split(key, 12)
    f32 = jnp.float32

    w1 = jax.random.normal(ks[0], (c2, in_c), f32) * (1.0 / jnp.sqrt(in_c))
    w2 = jax.random.normal(ks[1], (base_c, c2), f32) * (1.0 / jnp.sqrt(c2))
    w3 = jax.random.normal(ks[2], (base_c, 1), f32) * (1.0 / jnp.sqrt(base_c))
    b3 = jax.random.normal(ks[3], (1, 1), f32) * 0.1

    def folded_bn(kg, kb, km, kv, c):
        gamma = 1.0 + 0.2 * jax.random.normal(kg, (c, 1), f32)
        beta = 0.1 * jax.random.normal(kb, (c, 1), f32)
        mean = 0.1 * jax.random.normal(km, (c, 1), f32)
        var = 1.0 + 0.1 * jax.random.uniform(kv, (c, 1), dtype=f32)
        s = gamma / jnp.sqrt(var + 1e-5)
        t = beta - mean * s
        return s, t

    s1, t1 = folded_bn(ks[4], ks[5], ks[6], ks[7], c2)
    s2, t2 = folded_bn(ks[8], ks[9], ks[10], ks[11], base_c)
    return (w1, s1, t1, w2, s2, t2, w3, b3)


def reference_forward(vd, ed_last, params, metric='l2'):
    """Pure-JAX reference mirroring the PyTorch forward (eval-mode BN).

    The two hidden 1x1 convs use bf16 operands with f32 accumulation, matching
    the single-pass MXU matmuls in the kernel; the math is otherwise identical
    to the module.
    """
    w1, s1, t1, w2, s2, t2, w3, b3 = params
    f32, bf16 = jnp.float32, jnp.bfloat16
    w1f = (w1 * s1).astype(bf16)
    w2f = (w2 * s2).astype(bf16)

    diff = vd[:, :, None, :] - vd[:, None, :, :]               # (B,N,N,D)
    sim = diff ** 2 if metric == 'l2' else jnp.abs(diff)

    h = jnp.einsum('bijd,cd->bijc', sim.astype(bf16), w1f,
                   preferred_element_type=f32) + t1[:, 0]
    h = jnp.where(h >= 0, h, _NEG_SLOPE * h)
    h = jnp.einsum('bijc,ec->bije', h.astype(bf16), w2f,
                   preferred_element_type=f32) + t2[:, 0]
    h = jnp.where(h >= 0, h, _NEG_SLOPE * h)
    logits = jnp.einsum('bijc,co->bijo', h, w3,
                        precision=lax.Precision.HIGHEST)[..., 0] + b3[0, 0]
    ed_sig = jax.nn.sigmoid(logits)                            # (B,N,N)

    N = vd.shape[1]
    eye = jnp.eye(N, dtype=f32)
    ed_last_m = ed_last * (1.0 - eye)
    ed_sum = jnp.sum(ed_last_m, -1, keepdims=True)
    prod = ed_sig * ed_last_m
    l1 = jnp.maximum(jnp.sum(jnp.abs(prod), -1, keepdims=True), 1e-12)
    ed = prod / l1 * ed_sum + eye + 1e-6
    return ed / jnp.sum(ed, -1, keepdims=True)


if __name__ == "__main__":
    B, N = 2, 16          # batch, number of points
    in_c, base_c = 8, 8   # feature dim of vd_curr_gen, hidden width

    key = jax.random.PRNGKey(0)
    k_vd, k_ed, k_par = jax.random.split(key, 3)

    vd_curr_gen = jax.random.normal(k_vd, (B, N, in_c), jnp.float32)
    ed_last_gen = jax.random.uniform(k_ed, (B, N, N), jnp.float32)
    params = init_params(k_par, in_c, base_c)

    out = distribution_similarity(vd_curr_gen, ed_last_gen, params,
                                  distance_metric='l2')
    out = jax.block_until_ready(out)

    ref = reference_forward(vd_curr_gen, ed_last_gen, params, metric='l2')
    ref = jax.block_until_ready(ref)

    assert out.shape == (B, N, N)
    # Tolerance covers Mosaic-vs-XLA bf16 rounding / accumulation-order
    # differences in the single-pass MXU matmuls; structural bugs give
    # order-of-magnitude larger errors.
    max_err = float(jnp.max(jnp.abs(out - ref)))
    assert jnp.allclose(out, ref, rtol=2e-2, atol=2e-4), (
        f"max abs err {max_err}")

    print("KERNEL_OK")
</pallas_src>

<mosaic_0001>
module attributes {stable_mosaic.version = 11 : i64} {
  func.func @_dist_sim_kernel(%arg0: i32, %arg1: i32, %arg2: memref<1x8x128xf32, #tpu.memory_space<vmem>>, %arg3: memref<1x16x8xf32, #tpu.memory_space<vmem>>, %arg4: memref<1x16x128xf32, #tpu.memory_space<vmem>>, %arg5: memref<16x8xf32, #tpu.memory_space<vmem>>, %arg6: memref<16x1xf32, #tpu.memory_space<vmem>>, %arg7: memref<8x16xf32, #tpu.memory_space<vmem>>, %arg8: memref<8x1xf32, #tpu.memory_space<vmem>>, %arg9: memref<8x1xf32, #tpu.memory_space<vmem>>, %arg10: memref<1x1xf32, #tpu.memory_space<vmem>>, %arg11: memref<1x16x128xf32, #tpu.memory_space<vmem>>) attributes {dimension_semantics = [#tpu.dimension_semantics<parallel>, #tpu.dimension_semantics<parallel>], iteration_bounds = array<i64: 2, 1>, scalar_prefetch = 0 : i64, scratch_operands = 0 : i64, tpu.core_type = #tpu.core_type<tc>, window_params = [{transform_indices = @transform_0, window_bounds = array<i64: 1, 8, 128>}, {transform_indices = @transform_1, window_bounds = array<i64: 1, 16, 8>}, {transform_indices = @transform_2, window_bounds = array<i64: 1, 16, 128>}, {pipeline_mode = #tpu.pipeline_mode<synchronous>, transform_indices = @transform_3, window_bounds = array<i64: 16, 8>}, {pipeline_mode = #tpu.pipeline_mode<synchronous>, transform_indices = @transform_4, window_bounds = array<i64: 16, 1>}, {pipeline_mode = #tpu.pipeline_mode<synchronous>, transform_indices = @transform_5, window_bounds = array<i64: 8, 16>}, {pipeline_mode = #tpu.pipeline_mode<synchronous>, transform_indices = @transform_6, window_bounds = array<i64: 8, 1>}, {pipeline_mode = #tpu.pipeline_mode<synchronous>, transform_indices = @transform_7, window_bounds = array<i64: 8, 1>}, {pipeline_mode = #tpu.pipeline_mode<synchronous>, transform_indices = @transform_8, window_bounds = array<i64: 1, 1>}, {transform_indices = @transform_9, window_bounds = array<i64: 1, 16, 128>}]} {
    %c0 = arith.constant 0 : index
    %c0_0 = arith.constant 0 : index
    %c0_1 = arith.constant 0 : index
    %0 = vector.load %arg2[%c0, %c0_0, %c0_1] : memref<1x8x128xf32, #tpu.memory_space<vmem>>, vector<1x8x128xf32>
    %1 = vector.shape_cast %0 : vector<1x8x128xf32> to vector<8x128xf32>
    %c0_2 = arith.constant 0 : index
    %c0_3 = arith.constant 0 : index
    %c0_4 = arith.constant 0 : index
    %2 = vector.load %arg3[%c0_2, %c0_3, %c0_4] : memref<1x16x8xf32, #tpu.memory_space<vmem>>, vector<1x16x8xf32>
    %3 = vector.shape_cast %2 : vector<1x16x8xf32> to vector<16x8xf32>
    %4 = tpu.transpose %3, [1, 0] : vector<16x8xf32> -> vector<8x16xf32>
    %c0_5 = arith.constant 0 : index
    %c0_6 = arith.constant 0 : index
    %5 = vector.load %arg5[%c0_5, %c0_6] : memref<16x8xf32, #tpu.memory_space<vmem>>, vector<16x8xf32>
    %6 = arith.truncf %5 : vector<16x8xf32> to vector<16x8xbf16>
    %c0_7 = arith.constant 0 : index
    %c0_8 = arith.constant 0 : index
    %7 = vector.load %arg7[%c0_7, %c0_8] : memref<8x16xf32, #tpu.memory_space<vmem>>, vector<8x16xf32>
    %8 = arith.truncf %7 : vector<8x16xf32> to vector<8x16xbf16>
    %c0_9 = arith.constant 0 : index
    %c0_10 = arith.constant 0 : index
    %9 = vector.load %arg6[%c0_9, %c0_10] : memref<16x1xf32, #tpu.memory_space<vmem>>, vector<16x1xf32>
    %c0_11 = arith.constant 0 : index
    %c0_12 = arith.constant 0 : index
    %10 = vector.load %arg8[%c0_11, %c0_12] : memref<8x1xf32, #tpu.memory_space<vmem>>, vector<8x1xf32>
    %c0_13 = arith.constant 0 : index
    %c0_14 = arith.constant 0 : index
    %11 = vector.load %arg9[%c0_13, %c0_14] : memref<8x1xf32, #tpu.memory_space<vmem>>, vector<8x1xf32>
    %c0_15 = arith.constant 0 : index
    %c0_16 = arith.constant 0 : index
    %12 = vector.load %arg10[%c0_15, %c0_16] : memref<1x1xf32, #tpu.memory_space<vmem>>, vector<1x1xf32>
    %13 = tpu.iota {dimensions = array<i32: 1>} : vector<1x16xi32>
    %c0_i32 = arith.constant 0 : i32
    %c16_i32 = arith.constant 16 : i32
    %14 = arith.addi %c0_i32, %c16_i32 : i32
    %c1_i32 = arith.constant 1 : i32
    scf.for %arg12 = %c0_i32 to %14 step %c1_i32  : i32 {
      %c1_i32_39 = arith.constant 1 : i32
      %64 = arith.muli %arg12, %c1_i32_39 : i32
      %c0_i32_40 = arith.constant 0 : i32
      %65 = arith.addi %c0_i32_40, %64 : i32
      %66 = vector.broadcast %65 : i32 to vector<1x16xi32>
      %67 = arith.cmpi eq, %13, %66 : vector<1x16xi32>
      %cst_41 = arith.constant 1.000000e+00 : f32
      %cst_42 = arith.constant 0.000000e+00 : f32
      %68 = vector.broadcast %cst_41 : f32 to vector<1x16xf32>
      %69 = vector.broadcast %cst_42 : f32 to vector<1x16xf32>
      %70 = arith.select %67, %68, %69 : vector<1x16xi1>, vector<1x16xf32>
      %71 = vector.broadcast %70 : vector<1x16xf32> to vector<8x16xf32>
      %72 = arith.mulf %4, %71 : vector<8x16xf32>
      %cst_43 = arith.constant dense<0.000000e+00> : vector<8xf32>
      %73 = vector.multi_reduction <add>, %72, %cst_43 [1] : vector<8x16xf32> to vector<8xf32>
      %74 = vector.shape_cast %73 : vector<8xf32> to vector<8x1xf32>
      %75 = vector.broadcast %74 : vector<8x1xf32> to vector<8x128xf32>
      %76 = arith.subf %75, %1 : vector<8x128xf32>
      %77 = arith.mulf %76, %76 : vector<8x128xf32>
      %78 = arith.truncf %77 : vector<8x128xf32> to vector<8x128xbf16>
      %cst_44 = arith.constant dense<0.000000e+00> : vector<16x128xf32>
      %79 = tpu.matmul %6, %78, %cst_44 {dimension_numbers = #tpu.dot_dimension_numbers<[1], [0], [0], [1], [0, 0, 1, 1], [], []>} : vector<16x8xbf16>, vector<8x128xbf16>, vector<16x128xf32> -> vector<16x128xf32>
      %80 = vector.broadcast %9 : vector<16x1xf32> to vector<16x128xf32>
      %81 = arith.addf %79, %80 : vector<16x128xf32>
      %cst_45 = arith.constant 0.00999999977 : f32
      %82 = vector.broadcast %cst_45 : f32 to vector<16x128xf32>
      %83 = arith.mulf %82, %81 : vector<16x128xf32>
      %84 = arith.maximumf %81, %83 : vector<16x128xf32>
      %85 = arith.truncf %84 : vector<16x128xf32> to vector<16x128xbf16>
      %cst_46 = arith.constant dense<0.000000e+00> : vector<8x128xf32>
      %86 = tpu.matmul %8, %85, %cst_46 {dimension_numbers = #tpu.dot_dimension_numbers<[1], [0], [0], [1], [0, 0, 1, 1], [], []>} : vector<8x16xbf16>, vector<16x128xbf16>, vector<8x128xf32> -> vector<8x128xf32>
      %87 = vector.broadcast %10 : vector<8x1xf32> to vector<8x128xf32>
      %88 = arith.addf %86, %87 : vector<8x128xf32>
      %cst_47 = arith.constant 0.00999999977 : f32
      %89 = vector.broadcast %cst_47 : f32 to vector<8x128xf32>
      %90 = arith.mulf %89, %88 : vector<8x128xf32>
      %91 = arith.maximumf %88, %90 : vector<8x128xf32>
      %92 = vector.broadcast %11 : vector<8x1xf32> to vector<8x128xf32>
      %93 = arith.mulf %91, %92 : vector<8x128xf32>
      %cst_48 = arith.constant dense<0.000000e+00> : vector<128xf32>
      %94 = vector.multi_reduction <add>, %93, %cst_48 [0] : vector<8x128xf32> to vector<128xf32>
      %95 = vector.shape_cast %94 : vector<128xf32> to vector<1x128xf32>
      %96 = vector.broadcast %12 : vector<1x1xf32> to vector<1x128xf32>
      %97 = arith.addf %95, %96 : vector<1x128xf32>
      %c0_49 = arith.constant 0 : index
      %98 = arith.index_cast %65 : i32 to index
      %c0_50 = arith.constant 0 : index
      %99 = vector.load %arg11[%c0_49, %98, %c0_50] : memref<1x16x128xf32, #tpu.memory_space<vmem>>, vector<1x1x128xf32>
      %100 = vector.shape_cast %99 : vector<1x1x128xf32> to vector<1x128xf32>
      %101 = vector.shape_cast %97 : vector<1x128xf32> to vector<1x1x128xf32>
      tpu.vector_store %arg11[%c0_49, %98, %c0_50], %101 {strides = array<i32>} : memref<1x16x128xf32, #tpu.memory_space<vmem>>, vector<1x1x128xf32>,
    }
    %c16_i32_17 = arith.constant 16 : i32
    %c0_18 = arith.constant 0 : index
    %c0_19 = arith.constant 0 : index
    %c0_20 = arith.constant 0 : index
    %15 = vector.load %arg11[%c0_18, %c0_19, %c0_20] : memref<1x16x128xf32, #tpu.memory_space<vmem>>, vector<1x16x128xf32>
    %16 = vector.shape_cast %15 : vector<1x16x128xf32> to vector<16x128xf32>
    %17 = arith.negf %16 : vector<16x128xf32>
    %18 = math.exp %17 : vector<16x128xf32>
    %cst = arith.constant 1.000000e+00 : f32
    %19 = vector.broadcast %cst : f32 to vector<16x128xf32>
    %20 = arith.addf %19, %18 : vector<16x128xf32>
    %21 = arith.divf %19, %20 : vector<16x128xf32>
    %c0_21 = arith.constant 0 : index
    %c0_22 = arith.constant 0 : index
    %c0_23 = arith.constant 0 : index
    %22 = vector.load %arg4[%c0_21, %c0_22, %c0_23] : memref<1x16x128xf32, #tpu.memory_space<vmem>>, vector<1x16x128xf32>
    %23 = vector.shape_cast %22 : vector<1x16x128xf32> to vector<16x128xf32>
    %c16_i32_24 = arith.constant 16 : i32
    %24 = arith.muli %arg1, %c16_i32_24 : i32
    %25 = tpu.iota {dimensions = array<i32: 0>} : vector<16x128xi32>
    %26 = vector.broadcast %24 : i32 to vector<16x128xi32>
    %27 = arith.addi %26, %25 : vector<16x128xi32>
    %28 = tpu.iota {dimensions = array<i32: 1>} : vector<16x128xi32>
    %29 = arith.cmpi eq, %27, %28 : vector<16x128xi32>
    %cst_25 = arith.constant 1.000000e+00 : f32
    %cst_26 = arith.constant 0.000000e+00 : f32
    %30 = vector.broadcast %cst_25 : f32 to vector<16x128xf32>
    %31 = vector.broadcast %cst_26 : f32 to vector<16x128xf32>
    %32 = arith.select %29, %30, %31 : vector<16x128xi1>, vector<16x128xf32>
    %cst_27 = arith.constant 1.000000e+00 : f32
    %33 = vector.broadcast %cst_27 : f32 to vector<16x128xf32>
    %34 = arith.subf %33, %32 : vector<16x128xf32>
    %35 = arith.mulf %23, %34 : vector<16x128xf32>
    %cst_28 = arith.constant dense<0.000000e+00> : vector<16xf32>
    %36 = vector.multi_reduction <add>, %35, %cst_28 [1] : vector<16x128xf32> to vector<16xf32>
    %37 = vector.shape_cast %36 : vector<16xf32> to vector<16x1xf32>
    %38 = arith.mulf %21, %35 : vector<16x128xf32>
    %39 = math.absf %38 : vector<16x128xf32>
    %cst_29 = arith.constant dense<0.000000e+00> : vector<16xf32>
    %40 = vector.multi_reduction <add>, %39, %cst_29 [1] : vector<16x128xf32> to vector<16xf32>
    %41 = vector.shape_cast %40 : vector<16xf32> to vector<16x1xf32>
    %cst_30 = arith.constant 9.99999996E-13 : f32
    %42 = vector.broadcast %cst_30 : f32 to vector<16x1xf32>
    %43 = arith.maximumf %41, %42 : vector<16x1xf32>
    %44 = vector.broadcast %43 : vector<16x1xf32> to vector<16x128xf32>
    %45 = arith.divf %38, %44 : vector<16x128xf32>
    %46 = vector.broadcast %37 : vector<16x1xf32> to vector<16x128xf32>
    %47 = arith.mulf %45, %46 : vector<16x128xf32>
    %48 = arith.addf %47, %32 : vector<16x128xf32>
    %cst_31 = arith.constant 9.99999997E-7 : f32
    %49 = vector.broadcast %cst_31 : f32 to vector<16x128xf32>
    %50 = arith.addf %48, %49 : vector<16x128xf32>
    %c16_i32_32 = arith.constant 16 : i32
    %51 = vector.broadcast %c16_i32_32 : i32 to vector<16x128xi32>
    %52 = arith.cmpi slt, %28, %51 : vector<16x128xi32>
    %cst_33 = arith.constant 1.000000e+00 : f32
    %cst_34 = arith.constant 0.000000e+00 : f32
    %53 = vector.broadcast %cst_33 : f32 to vector<16x128xf32>
    %54 = vector.broadcast %cst_34 : f32 to vector<16x128xf32>
    %55 = arith.select %52, %53, %54 : vector<16x128xi1>, vector<16x128xf32>
    %56 = arith.mulf %50, %55 : vector<16x128xf32>
    %cst_35 = arith.constant dense<0.000000e+00> : vector<16xf32>
    %57 = vector.multi_reduction <add>, %56, %cst_35 [1] : vector<16x128xf32> to vector<16xf32>
    %58 = vector.shape_cast %57 : vector<16xf32> to vector<16x1xf32>
    %59 = vector.broadcast %58 : vector<16x1xf32> to vector<16x128xf32>
    %60 = arith.divf %56, %59 : vector<16x128xf32>
    %c0_36 = arith.constant 0 : index
    %c0_37 = arith.constant 0 : index
    %c0_38 = arith.constant 0 : index
    %61 = vector.load %arg11[%c0_36, %c0_37, %c0_38] : memref<1x16x128xf32, #tpu.memory_space<vmem>>, vector<1x16x128xf32>
    %62 = vector.shape_cast %61 : vector<1x16x128xf32> to vector<16x128xf32>
    %63 = vector.shape_cast %60 : vector<16x128xf32> to vector<1x16x128xf32>
    tpu.vector_store %arg11[%c0_36, %c0_37, %c0_38], %63 {strides = array<i32>} : memref<1x16x128xf32, #tpu.memory_space<vmem>>, vector<1x16x128xf32>,
    return
  }
  func.func @transform_0(%arg0: i32, %arg1: i32) -> (i32, i32, i32) {
    %c0_i32 = arith.constant 0 : i32
    %c0_i32_0 = arith.constant 0 : i32
    %c0_i32_1 = arith.constant 0 : i32
    return %arg0, %c0_i32, %c0_i32_0 : i32, i32, i32
  }
  func.func @transform_1(%arg0: i32, %arg1: i32) -> (i32, i32, i32) {
    %c0_i32 = arith.constant 0 : i32
    %c0_i32_0 = arith.constant 0 : i32
    return %arg0, %arg1, %c0_i32 : i32, i32, i32
  }
  func.func @transform_2(%arg0: i32, %arg1: i32) -> (i32, i32, i32) {
    %c0_i32 = arith.constant 0 : i32
    %c0_i32_0 = arith.constant 0 : i32
    return %arg0, %arg1, %c0_i32 : i32, i32, i32
  }
  func.func @transform_3(%arg0: i32, %arg1: i32) -> (i32, i32) {
    %c0_i32 = arith.constant 0 : i32
    %c0_i32_0 = arith.constant 0 : i32
    %c0_i32_1 = arith.constant 0 : i32
    return %c0_i32, %c0_i32_0 : i32, i32
  }
  func.func @transform_4(%arg0: i32, %arg1: i32) -> (i32, i32) {
    %c0_i32 = arith.constant 0 : i32
    %c0_i32_0 = arith.constant 0 : i32
    %c0_i32_1 = arith.constant 0 : i32
    return %c0_i32, %c0_i32_0 : i32, i32
  }
  func.func @transform_5(%arg0: i32, %arg1: i32) -> (i32, i32) {
    %c0_i32 = arith.constant 0 : i32
    %c0_i32_0 = arith.constant 0 : i32
    %c0_i32_1 = arith.constant 0 : i32
    return %c0_i32, %c0_i32_0 : i32, i32
  }
  func.func @transform_6(%arg0: i32, %arg1: i32) -> (i32, i32) {
    %c0_i32 = arith.constant 0 : i32
    %c0_i32_0 = arith.constant 0 : i32
    %c0_i32_1 = arith.constant 0 : i32
    return %c0_i32, %c0_i32_0 : i32, i32
  }
  func.func @transform_7(%arg0: i32, %arg1: i32) -> (i32, i32) {
    %c0_i32 = arith.constant 0 : i32
    %c0_i32_0 = arith.constant 0 : i32
    %c0_i32_1 = arith.constant 0 : i32
    return %c0_i32, %c0_i32_0 : i32, i32
  }
  func.func @transform_8(%arg0: i32, %arg1: i32) -> (i32, i32) {
    %c0_i32 = arith.constant 0 : i32
    %c0_i32_0 = arith.constant 0 : i32
    %c0_i32_1 = arith.constant 0 : i32
    return %c0_i32, %c0_i32_0 : i32, i32
  }
  func.func @transform_9(%arg0: i32, %arg1: i32) -> (i32, i32, i32) {
    %c0_i32 = arith.constant 0 : i32
    %c0_i32_0 = arith.constant 0 : i32
    return %arg0, %arg1, %c0_i32 : i32, i32, i32
  }
}

</mosaic_0001>

<llo_original>
// kernel: tpu_custom_call.1
$region0: #{tpu_custom_call.1}
  #allocation0 [shape = 'u32[]', space=smem, size = 0x4, offset = 0x4, fixed_abs, tag = 'smem constant byte address 0x4 - core index']
  #allocation1 [shape = 'u32[144,128]{1,0:T(1,128)}', space=vmem, size = 0x12000, scoped, tag = 'internal scratch']
  #allocation2 [shape = 'f32[1,1]{1,0:T(1,128)S(1)}', space=vmem, size = 0x200, scoped, tag = 'scoped memory for tpu_custom_call.1']
  %s0 = inlined_call_operand.vmem [shape: f32[2,8,128], index: 0, kind: input, shape index: {}]
  %s1 = inlined_call_operand.vmem [shape: f32[2,16,8], index: 1, kind: input, shape index: {}]
  %s2 = inlined_call_operand.vmem [shape: f32[2,16,128], index: 2, kind: input, shape index: {}]
  %s3 = inlined_call_operand.vmem [shape: f32[16,8], index: 3, kind: input, shape index: {}]
  %s4 = inlined_call_operand.vmem [shape: f32[16,1], index: 4, kind: input, shape index: {}]
  %s5 = inlined_call_operand.vmem [shape: f32[8,16], index: 5, kind: input, shape index: {}]
  %s6 = inlined_call_operand.vmem [shape: f32[8,1], index: 6, kind: input, shape index: {}]
  %s7 = inlined_call_operand.vmem [shape: f32[8,1], index: 7, kind: input, shape index: {}]
  %s8 = inlined_call_operand.<no memory space> [shape: f32[1,1], index: 8, kind: input, shape index: {}]
  %s9 = inlined_call_operand.hbm [shape: f32[2,16,128], index: 9, kind: output, shape index: {}]
  %s10 = sld [smem:[#allocation0]]
  $region76: #{tpu_custom_call.1} parent=0
    _
  %s12 = ssub.s32 1, %s10
  %s13 = scalar_select 0, %s12, %s10
  %v14 = vstv %s8
  %15 = vst [vmem:[#allocation2] sm:$0x1] %v14
  $region1: #{tpu_custom_call.1} parent=0
    #allocation3 [shape = 'u8[16384]{0}', space=vmem, size = 0x4000, scoped, tag = 'output window, operand 0']
    #allocation4 [shape = 's32[2]{0}', space=sflag, size = 0x8, scoped, tag = 'scoped memory for tpu_custom_call.1']
    %16 = vsyncpa [#allocation4], 0
    %s17 = scalar_lea.sflag [#allocation4], 1
    %18 = vsyncpa %s17, 0
    loop: start=0, step=1, limit=4
    $region2: #{tpu_custom_call.1} parent=1 // loop_pre_header
      _
    $region3: #{tpu_custom_call.1} parent=1 // loop_header
      %s20 = sphi 0, %s24
      %p21 = scmp.ge.s32.totalorder %s20, 4
      %s27 = sphi 0, %s39
      %s28 = sphi 0, %s35
      %s29 = sphi 0, %s27
      %s30 = sphi 0, %s28
      %s31 = sphi 0, %s29
      %s32 = sphi 0, %s30
      %s42 = sphi 0, %s44
      %s45 = sphi 0, %s42
      %s46 = sphi 0, %s45
      %s62 = sphi 0, %s46
      %s70 = sphi 0, %s72
      %s73 = sphi 0, %s70
      %s74 = sphi 0, %s73
      %s90 = sphi 0, %s74
      %s98 = sphi 0, %s100
      %s101 = sphi 0, %s98
      %s102 = sphi 0, %s101
      %s118 = sphi 0, %s102
      %s122 = sphi 0, %s122
      %s124 = sphi 0, %s122
      %s125 = sphi 0, %s124
      %s139 = sphi 0, %s125
      %s143 = sphi 0, %s143
      %s145 = sphi 0, %s143
      %s146 = sphi 0, %s145
      %s160 = sphi 0, %s146
      %s164 = sphi 0, %s164
      %s166 = sphi 0, %s164
      %s167 = sphi 0, %s166
      %s181 = sphi 0, %s167
      %s185 = sphi 0, %s185
      %s187 = sphi 0, %s185
      %s188 = sphi 0, %s187
      %s202 = sphi 0, %s188
      %s206 = sphi 0, %s206
      %s208 = sphi 0, %s206
      %s209 = sphi 0, %s208
      %s223 = sphi 0, %s209
      %s227 = sphi 0, %s227
      %s229 = sphi 0, %s227
      %s230 = sphi 0, %s229
      %s244 = sphi 0, %s230
      %s252 = sphi 0, %s254
      %s255 = sphi 0, %s252
      %s256 = sphi 0, %s255
      %s272 = sphi 0, %s256
    $region4: #{tpu_custom_call.1} parent=1 // loop_header_branch
      %23 = sbr.rel (%p21) target = $region8
    $region5: #{tpu_custom_call.1} parent=1 // loop_body
      %s25 = ssub.s32 %s20, 1
      %s26 = ssub.s32 %s20, 2
      %s33 = sadd.s32 1, %s28
      %p34 = scmp.ge.s32.totalorder %s33, 1
      %s35 = scalar_select %p34, 0, %s33
      %s36 = sadd.s32 1, %s27
      %s37 = scalar_select %p34, %s36, %s27
      %p38 = scmp.ge.s32.totalorder %s37, 2
      %s39 = scalar_select %p38, 0, %s37
      %s40 = ssub.s32 %s27, %s39
      %p41 = scmp.eq.s32.totalorder %s40, 0
      %s43 = sadd.s32 %s42, 1
      %s44 = scalar_select %p41, %s42, %s43
      %p47 = pneg %p41
      %p48 = scmp.eq.s32.totalorder %s20, 1
      %p49 = por %p47, %p48
      %p50 = scmp.ne.s32.totalorder %s42, %s45
      %p51 = scmp.eq.s32.totalorder %s20, 0
      %p52 = por %p50, %p51
      %p53 = scmp.ne.s32.totalorder %s42, %s45
      %p54 = scmp.eq.s32.totalorder %s25, 1
      %p55 = por %p53, %p54
      %p56 = scmp.ne.s32.totalorder %s45, %s46
      %p57 = scmp.eq.s32.totalorder %s25, 0
      %p58 = por %p56, %p57
      %p59 = scmp.ne.s32.totalorder %s45, %s46
      %p60 = scmp.eq.s32.totalorder %s26, 1
      %p61 = por %p59, %p60
      %p63 = scmp.ne.s32.totalorder %s46, %s62
      %p64 = scmp.eq.s32.totalorder %s26, 0
      %p65 = por %p63, %p64
      %s66 = ssub.s32 %s27, %s39
      %s67 = ssub.s32 %s28, %s35
      %s68 = sor.u32 %s66, %s67
      %p69 = scmp.eq.s32.totalorder %s68, 0
      %s71 = sadd.s32 %s70, 1
      %s72 = scalar_select %p69, %s70, %s71
      %p75 = pneg %p69
      %p76 = scmp.eq.s32.totalorder %s20, 1
      %p77 = por %p75, %p76
      %p78 = scmp.ne.s32.totalorder %s70, %s73
      %p79 = scmp.eq.s32.totalorder %s20, 0
      %p80 = por %p78, %p79
      %p81 = scmp.ne.s32.totalorder %s70, %s73
      %p82 = scmp.eq.s32.totalorder %s25, 1
      %p83 = por %p81, %p82
      %p84 = scmp.ne.s32.totalorder %s73, %s74
      %p85 = scmp.eq.s32.totalorder %s25, 0
      %p86 = por %p84, %p85
      %p87 = scmp.ne.s32.totalorder %s73, %s74
      %p88 = scmp.eq.s32.totalorder %s26, 1
      %p89 = por %p87, %p88
      %p91 = scmp.ne.s32.totalorder %s74, %s90
      %p92 = scmp.eq.s32.totalorder %s26, 0
      %p93 = por %p91, %p92
      %s94 = ssub.s32 %s27, %s39
      %s95 = ssub.s32 %s28, %s35
      %s96 = sor.u32 %s94, %s95
      %p97 = scmp.eq.s32.totalorder %s96, 0
      %s99 = sadd.s32 %s98, 1
      %s100 = scalar_select %p97, %s98, %s99
      %p103 = pneg %p97
      %p104 = scmp.eq.s32.totalorder %s20, 1
      %p105 = por %p103, %p104
      %p106 = scmp.ne.s32.totalorder %s98, %s101
      %p107 = scmp.eq.s32.totalorder %s20, 0
      %p108 = por %p106, %p107
      %p109 = scmp.ne.s32.totalorder %s98, %s101
      %p110 = scmp.eq.s32.totalorder %s25, 1
      %p111 = por %p109, %p110
      %p112 = scmp.ne.s32.totalorder %s101, %s102
      %p113 = scmp.eq.s32.totalorder %s25, 0
      %p114 = por %p112, %p113
      %p115 = scmp.ne.s32.totalorder %s101, %s102
      %p116 = scmp.eq.s32.totalorder %s26, 1
      %p117 = por %p115, %p116
      %p119 = scmp.ne.s32.totalorder %s102, %s118
      %p120 = scmp.eq.s32.totalorder %s26, 0
      %p121 = por %p119, %p120
      %s123 = sadd.s32 %s122, 1
      %p126 = scmp.eq.s32.totalorder %s20, 1
      %p127 = scmp.ne.s32.totalorder %s122, %s124
      %p128 = scmp.eq.s32.totalorder %s20, 0
      %p129 = por %p127, %p128
      %p130 = scmp.ne.s32.totalorder %s122, %s124
      %p131 = scmp.eq.s32.totalorder %s25, 1
      %p132 = por %p130, %p131
      %p133 = scmp.ne.s32.totalorder %s124, %s125
      %p134 = scmp.eq.s32.totalorder %s25, 0
      %p135 = por %p133, %p134
      %p136 = scmp.ne.s32.totalorder %s124, %s125
      %p137 = scmp.eq.s32.totalorder %s26, 1
      %p138 = por %p136, %p137
      %p140 = scmp.ne.s32.totalorder %s125, %s139
      %p141 = scmp.eq.s32.totalorder %s26, 0
      %p142 = por %p140, %p141
      %s144 = sadd.s32 %s143, 1
      %p147 = scmp.eq.s32.totalorder %s20, 1
      %p148 = scmp.ne.s32.totalorder %s143, %s145
      %p149 = scmp.eq.s32.totalorder %s20, 0
      %p150 = por %p148, %p149
      %p151 = scmp.ne.s32.totalorder %s143, %s145
      %p152 = scmp.eq.s32.totalorder %s25, 1
      %p153 = por %p151, %p152
      %p154 = scmp.ne.s32.totalorder %s145, %s146
      %p155 = scmp.eq.s32.totalorder %s25, 0
      %p156 = por %p154, %p155
      %p157 = scmp.ne.s32.totalorder %s145, %s146
      %p158 = scmp.eq.s32.totalorder %s26, 1
      %p159 = por %p157, %p158
      %p161 = scmp.ne.s32.totalorder %s146, %s160
      %p162 = scmp.eq.s32.totalorder %s26, 0
      %p163 = por %p161, %p162
      %s165 = sadd.s32 %s164, 1
      %p168 = scmp.eq.s32.totalorder %s20, 1
      %p169 = scmp.ne.s32.totalorder %s164, %s166
      %p170 = scmp.eq.s32.totalorder %s20, 0
      %p171 = por %p169, %p170
      %p172 = scmp.ne.s32.totalorder %s164, %s166
      %p173 = scmp.eq.s32.totalorder %s25, 1
      %p174 = por %p172, %p173
      %p175 = scmp.ne.s32.totalorder %s166, %s167
      %p176 = scmp.eq.s32.totalorder %s25, 0
      %p177 = por %p175, %p176
      %p178 = scmp.ne.s32.totalorder %s166, %s167
      %p179 = scmp.eq.s32.totalorder %s26, 1
      %p180 = por %p178, %p179
      %p182 = scmp.ne.s32.totalorder %s167, %s181
      %p183 = scmp.eq.s32.totalorder %s26, 0
      %p184 = por %p182, %p183
      %s186 = sadd.s32 %s185, 1
      %p189 = scmp.eq.s32.totalorder %s20, 1
      %p190 = scmp.ne.s32.totalorder %s185, %s187
      %p191 = scmp.eq.s32.totalorder %s20, 0
      %p192 = por %p190, %p191
      %p193 = scmp.ne.s32.totalorder %s185, %s187
      %p194 = scmp.eq.s32.totalorder %s25, 1
      %p195 = por %p193, %p194
      %p196 = scmp.ne.s32.totalorder %s187, %s188
      %p197 = scmp.eq.s32.totalorder %s25, 0
      %p198 = por %p196, %p197
      %p199 = scmp.ne.s32.totalorder %s187, %s188
      %p200 = scmp.eq.s32.totalorder %s26, 1
      %p201 = por %p199, %p200
      %p203 = scmp.ne.s32.totalorder %s188, %s202
      %p204 = scmp.eq.s32.totalorder %s26, 0
      %p205 = por %p203, %p204
      %s207 = sadd.s32 %s206, 1
      %p210 = scmp.eq.s32.totalorder %s20, 1
      %p211 = scmp.ne.s32.totalorder %s206, %s208
      %p212 = scmp.eq.s32.totalorder %s20, 0
      %p213 = por %p211, %p212
      %p214 = scmp.ne.s32.totalorder %s206, %s208
      %p215 = scmp.eq.s32.totalorder %s25, 1
      %p216 = por %p214, %p215
      %p217 = scmp.ne.s32.totalorder %s208, %s209
      %p218 = scmp.eq.s32.totalorder %s25, 0
      %p219 = por %p217, %p218
      %p220 = scmp.ne.s32.totalorder %s208, %s209
      %p221 = scmp.eq.s32.totalorder %s26, 1
      %p222 = por %p220, %p221
      %p224 = scmp.ne.s32.totalorder %s209, %s223
      %p225 = scmp.eq.s32.totalorder %s26, 0
      %p226 = por %p224, %p225
      %s228 = sadd.s32 %s227, 1
      %p231 = scmp.eq.s32.totalorder %s20, 1
      %p232 = scmp.ne.s32.totalorder %s227, %s229
      %p233 = scmp.eq.s32.totalorder %s20, 0
      %p234 = por %p232, %p233
      %p235 = scmp.ne.s32.totalorder %s227, %s229
      %p236 = scmp.eq.s32.totalorder %s25, 1
      %p237 = por %p235, %p236
      %p238 = scmp.ne.s32.totalorder %s229, %s230
      %p239 = scmp.eq.s32.totalorder %s25, 0
      %p240 = por %p238, %p239
      %p241 = scmp.ne.s32.totalorder %s229, %s230
      %p242 = scmp.eq.s32.totalorder %s26, 1
      %p243 = por %p241, %p242
      %p245 = scmp.ne.s32.totalorder %s230, %s244
      %p246 = scmp.eq.s32.totalorder %s26, 0
      %p247 = por %p245, %p246
      %s248 = ssub.s32 %s27, %s39
      %s249 = ssub.s32 %s28, %s35
      %s250 = sor.u32 %s248, %s249
      %p251 = scmp.eq.s32.totalorder %s250, 0
      %s253 = sadd.s32 %s252, 1
      %s254 = scalar_select %p251, %s252, %s253
      %p257 = pneg %p251
      %p258 = scmp.eq.s32.totalorder %s20, 1
      %p259 = por %p257, %p258
      %p260 = scmp.ne.s32.totalorder %s252, %s255
      %p261 = scmp.eq.s32.totalorder %s20, 0
      %p262 = por %p260, %p261
      %p263 = scmp.ne.s32.totalorder %s252, %s255
      %p264 = scmp.eq.s32.totalorder %s25, 1
      %p265 = por %p263, %p264
      %p266 = scmp.ne.s32.totalorder %s255, %s256
      %p267 = scmp.eq.s32.totalorder %s25, 0
      %p268 = por %p266, %p267
      %p269 = scmp.ne.s32.totalorder %s255, %s256
      %p270 = scmp.eq.s32.totalorder %s26, 1
      %p271 = por %p269, %p270
      %p273 = scmp.ne.s32.totalorder %s256, %s272
      %p274 = scmp.eq.s32.totalorder %s26, 0
      %p275 = por %p273, %p274
      %p276 = scmp.le.s32.totalorder 1, %s20
      %p277 = scmp.lt.s32.totalorder %s20, 3
      %p278 = pnand %p276, %p277
      %p279 = pneg %p278
      // Predicated region
      $region9: #{tpu_custom_call.1} parent=5 // pred_check
        _
      $region10: #{tpu_custom_call.1} parent=5 // pred_check_branch
        %281 = sbr.rel (%p278) target = $region12
      $region11: #{tpu_custom_call.1} parent=5 // pred_region
        %s282 = ssub.s32 %s20, 1
        // Predicated region
        $region13: #{tpu_custom_call.1} parent=11 // pred_check
          %p283 = pneg %p135
        $region14: #{tpu_custom_call.1} parent=11 // pred_check_branch
          %285 = sbr.rel (%p283) target = $region16
        $region15: #{tpu_custom_call.1} parent=11 // pred_region
          _
        $region16: #{tpu_custom_call.1} parent=11 // pred_fallthru
          _
        // Predicated region
        $region17: #{tpu_custom_call.1} parent=11 // pred_check
          %p286 = pneg %p156
        $region18: #{tpu_custom_call.1} parent=11 // pred_check_branch
          %288 = sbr.rel (%p286) target = $region20
        $region19: #{tpu_custom_call.1} parent=11 // pred_region
          _
        $region20: #{tpu_custom_call.1} parent=11 // pred_fallthru
          _
        // Predicated region
        $region21: #{tpu_custom_call.1} parent=11 // pred_check
          %p289 = pneg %p177
        $region22: #{tpu_custom_call.1} parent=11 // pred_check_branch
          %291 = sbr.rel (%p289) target = $region24
        $region23: #{tpu_custom_call.1} parent=11 // pred_region
          _
        $region24: #{tpu_custom_call.1} parent=11 // pred_fallthru
          _
        // Predicated region
        $region25: #{tpu_custom_call.1} parent=11 // pred_check
          %p292 = pneg %p198
        $region26: #{tpu_custom_call.1} parent=11 // pred_check_branch
          %294 = sbr.rel (%p292) target = $region28
        $region27: #{tpu_custom_call.1} parent=11 // pred_region
          _
        $region28: #{tpu_custom_call.1} parent=11 // pred_fallthru
          _
        // Predicated region
        $region29: #{tpu_custom_call.1} parent=11 // pred_check
          %p295 = pneg %p219
        $region30: #{tpu_custom_call.1} parent=11 // pred_check_branch
          %297 = sbr.rel (%p295) target = $region32
        $region31: #{tpu_custom_call.1} parent=11 // pred_region
          _
        $region32: #{tpu_custom_call.1} parent=11 // pred_fallthru
          _
        // Predicated region
        $region33: #{tpu_custom_call.1} parent=11 // pred_check
          %p298 = pneg %p240
        $region34: #{tpu_custom_call.1} parent=11 // pred_check_branch
          %300 = sbr.rel (%p298) target = $region36
        $region35: #{tpu_custom_call.1} parent=11 // pred_region
          _
        $region36: #{tpu_custom_call.1} parent=11 // pred_fallthru
          _
      $region12: #{tpu_custom_call.1} parent=5 // pred_fallthru
        _
      %p301 = scmp.lt.s32.totalorder %s20, 2
      // Predicated region
      $region37: #{tpu_custom_call.1} parent=5 // pred_check
        %p302 = pneg %p301
      $region38: #{tpu_custom_call.1} parent=5 // pred_check_branch
        %304 = sbr.rel (%p302) target = $region40
      $region39: #{tpu_custom_call.1} parent=5 // pred_region
        // Predicated region
        $region41: #{tpu_custom_call.1} parent=39 // pred_check
          %p305 = pneg %p52
        $region42: #{tpu_custom_call.1} parent=39 // pred_check_branch
          %307 = sbr.rel (%p305) target = $region44
        $region43: #{tpu_custom_call.1} parent=39 // pred_region
          %p308 = scmp.lt.s32.totalorder %s27, 1
          %s309 = scalar_select %p308, %s27, 1
          %s310 = smul.addr %s309, 8
          %s311 = scalar_lea.vmem %s0, %s310
        $region44: #{tpu_custom_call.1} parent=39 // pred_fallthru
          _
        // Predicated region
        $region45: #{tpu_custom_call.1} parent=39 // pred_check
          %p312 = pneg %p80
        $region46: #{tpu_custom_call.1} parent=39 // pred_check_branch
          %314 = sbr.rel (%p312) target = $region48
        $region47: #{tpu_custom_call.1} parent=39 // pred_region
          %s315 = smul.u32 2, %s28
          %p316 = scmp.lt.s32.totalorder %s27, 1
          %s317 = scalar_select %p316, %s27, 1
          %p318 = scmp.lt.s32.totalorder %s315, 1
          %s319 = scalar_select %p318, %s315, 1
          %s320 = smul.addr %s317, 2
          %s321 = sadd.s32 %s319, %s320
          %s322 = smul.addr %s321, 8
          %s323 = scalar_lea.vmem %s1, %s322
          %s324 = smul.u32 2, %s28
        $region48: #{tpu_custom_call.1} parent=39 // pred_fallthru
          _
        // Predicated region
        $region49: #{tpu_custom_call.1} parent=39 // pred_check
          %p325 = pneg %p108
        $region50: #{tpu_custom_call.1} parent=39 // pred_check_branch
          %327 = sbr.rel (%p325) target = $region52
        $region51: #{tpu_custom_call.1} parent=39 // pred_region
          %s328 = smul.u32 2, %s28
          %p329 = scmp.lt.s32.totalorder %s27, 1
          %s330 = scalar_select %p329, %s27, 1
          %p331 = scmp.lt.s32.totalorder %s328, 1
          %s332 = scalar_select %p331, %s328, 1
          %s333 = smul.addr %s330, 2
          %s334 = sadd.s32 %s332, %s333
          %s335 = smul.addr %s334, 8
          %s336 = scalar_lea.vmem %s2, %s335
          %s337 = smul.u32 2, %s28
        $region52: #{tpu_custom_call.1} parent=39 // pred_fallthru
          _
      $region40: #{tpu_custom_call.1} parent=5 // pred_fallthru
        _
      %p338 = scmp.le.s32.totalorder 1, %s20
      %p339 = scmp.lt.s32.totalorder %s20, 3
      %p340 = pnand %p338, %p339
      %p341 = pneg %p340
      // Predicated region
      $region53: #{tpu_custom_call.1} parent=5 // pred_check
        _
      $region54: #{tpu_custom_call.1} parent=5 // pred_check_branch
        %343 = sbr.rel (%p340) target = $region56
      $region55: #{tpu_custom_call.1} parent=5 // pred_region
        %s344 = ssub.s32 %s20, 1
        %p345 = scmp.lt.s32.totalorder %s29, 1
        %s346 = scalar_select %p345, %s29, 1
        %s347 = smul.addr %s346, 8
        %s348 = scalar_lea.vmem %s0, %s347
        %p349 = pneg %p58
        %p350 = pneg %p55
        %s351 = smul.u32 2, %s30
        %p352 = scmp.lt.s32.totalorder %s29, 1
        %s353 = scalar_select %p352, %s29, 1
        %p354 = scmp.lt.s32.totalorder %s351, 1
        %s355 = scalar_select %p354, %s351, 1
        %s356 = smul.addr %s353, 2
        %s357 = sadd.s32 %s355, %s356
        %s358 = smul.addr %s357, 8
        %s359 = scalar_lea.vmem %s1, %s358
        %p360 = pneg %p86
        %p361 = pneg %p83
        %s362 = smul.u32 2, %s30
        %p363 = scmp.lt.s32.totalorder %s29, 1
        %s364 = scalar_select %p363, %s29, 1
        %p365 = scmp.lt.s32.totalorder %s362, 1
        %s366 = scalar_select %p365, %s362, 1
        %s367 = smul.addr %s364, 2
        %s368 = sadd.s32 %s366, %s367
        %s369 = smul.addr %s368, 8
        %s370 = scalar_lea.vmem %s2, %s369
        %p371 = pneg %p114
        %p372 = pneg %p111
        %p373 = pneg %p135
        %p374 = pneg %p132
        %p375 = pneg %p156
        %p376 = pneg %p153
        %p377 = pneg %p177
        %p378 = pneg %p174
        %p379 = pneg %p198
        %p380 = pneg %p195
        %p381 = pneg %p219
        %p382 = pneg %p216
        %p383 = pneg %p240
        %p384 = pneg %p237
        %p385 = pneg %p268
        %p386 = pneg %p265
        %s387 = sand.u32 %s255, 1
        %s388 = scalar_lea.sflag [#allocation4], %s387
        %s389 = sand.u32 %s255, 1
        %s390 = smul.addr %s389, 16
        %s391 = scalar_lea.vmem [#allocation3], %s390
        %p392 = scmp.lt.s32.totalorder %s29, 1
        %s393 = scalar_select %p392, %s29, 1
        %s394 = smul.addr %s393, 8
        %s395 = scalar_lea.vmem %s0, %s394
        %s396 = smul.u32 2, %s30
        %p397 = scmp.lt.s32.totalorder %s29, 1
        %s398 = scalar_select %p397, %s29, 1
        %p399 = scmp.lt.s32.totalorder %s396, 1
        %s400 = scalar_select %p399, %s396, 1
        %s401 = smul.addr %s398, 2
        %s402 = sadd.s32 %s400, %s401
        %s403 = smul.addr %s402, 8
        %s404 = scalar_lea.vmem %s1, %s403
        %s405 = smul.u32 2, %s30
        %s406 = smul.u32 2, %s30
        %p407 = scmp.lt.s32.totalorder %s29, 1
        %s408 = scalar_select %p407, %s29, 1
        %p409 = scmp.lt.s32.totalorder %s406, 1
        %s410 = scalar_select %p409, %s406, 1
        %s411 = smul.addr %s408, 2
        %s412 = sadd.s32 %s410, %s411
        %s413 = smul.addr %s412, 8
        %s414 = scalar_lea.vmem %s2, %s413
        %s415 = smul.u32 2, %s30
        %s416 = smul.u32 2, %s30
        %v418 = vld [vmem:[%s395] sm:$0xff]
        %v419 = vld [vmem:[%s404] sm:$0xff]
        %v420 = vld [vmem:[%s404 + $0x8] sm:$0xff]
        %421 = vxpose.xlu0.b32.start [1/16] %v419, 128
        %422 = vxpose.xlu0.b32.cont [2/16] %v420, 128
        %423 = vxpose.xlu0.b32.cont [3/16] 0.0, 128
        %424 = vxpose.xlu0.b32.cont [4/16] 0.0, 128
        %425 = vxpose.xlu0.b32.cont [5/16] 0.0, 128
        %426 = vxpose.xlu0.b32.cont [6/16] 0.0, 128
        %427 = vxpose.xlu0.b32.cont [7/16] 0.0, 128
        %428 = vxpose.xlu0.b32.cont [8/16] 0.0, 128
        %429 = vxpose.xlu0.b32.cont [9/16] 0.0, 128
        %430 = vxpose.xlu0.b32.cont [10/16] 0.0, 128
        %431 = vxpose.xlu0.b32.cont [11/16] 0.0, 128
        %432 = vxpose.xlu0.b32.cont [12/16] 0.0, 128
        %433 = vxpose.xlu0.b32.cont [13/16] 0.0, 128
        %434 = vxpose.xlu0.b32.cont [14/16] 0.0, 128
        %435 = vxpose.xlu0.b32.cont [15/16] 0.0, 128
        %436 = vxpose.xlu0.b32.end [16/16] 0.0, 128
        %v437 = vpop.trf.xlu0
        %v438 = vpop.trf.xlu0
        %v439 = vpop.trf.xlu0
        %v440 = vpop.trf.xlu0
        %v441 = vpop.trf.xlu0
        %v442 = vpop.trf.xlu0
        %v443 = vpop.trf.xlu0
        %v444 = vpop.trf.xlu0
        %v445 = vpop.trf.xlu0
        %v446 = vpop.trf.xlu0
        %v447 = vpop.trf.xlu0
        %v448 = vpop.trf.xlu0
        %v449 = vpop.trf.xlu0
        %v450 = vpop.trf.xlu0
        %v451 = vpop.trf.xlu0
        %v452 = vpop.trf.xlu0
        %v453 = vld [vmem:[%s3] sm:$0xff]
        %v454 = vld [vmem:[%s3 + $0x8] sm:$0xff]
        %v455 = vpack.c.bf16 %v454, %v453
        %v456 = vld [vmem:[%s5] sm:$0xff]
        %v457 = vpack.c.bf16 %v456, %v456
        %v458 = vld [vmem:[%s4] sm:$0xff]
        %v459 = vld [vmem:[%s4 + $0x8] sm:$0xff]
        %v460 = vld [vmem:[%s6] sm:$0xff]
        %v461 = vld [vmem:[%s7] sm:$0xff]
        %v462 = vld [vmem:[#allocation2] sm:$0x1]
        %v463 = vlaneseq
        %v464 = vand.u32 %v463, 127
        loop: start=0, step=1, limit=16
        $region57: #{tpu_custom_call.1} parent=55 // loop_pre_header
          _
        $region58: #{tpu_custom_call.1} parent=55 // loop_header
          %s466 = sphi 0, %s470
          %p467 = scmp.ge.s32.totalorder %s466, 16
        $region59: #{tpu_custom_call.1} parent=55 // loop_header_branch
          %469 = sbr.rel (%p467) target = $region63
        $region60: #{tpu_custom_call.1} parent=55 // loop_body
          %v471 = vstv %s466
          %vm472 = vcmp.eq.s32.totalorder %v464, %v471
          %v473 = vsel %vm472, 1.0, 0.0
          %v474 = vmul.f32 %v437, %v473
          %vm475 = vcmask 130048
          %v476 = vsel %vm475, %v474, 0.0
          %477 = vadd.xlane.f32.xlu0 %v476
          %v478 = vpop.xlane.xlu0 %477
          %v479 = vsub.f32 %v478, %v418
          %v480 = vmul.f32 %v479, %v479
          %v481 = vpack.c.bf16 %v480, %v480
          %483 = vset.pattern.permute.xlu0 0
          %484 = vperm.xlu0 %483, %v458
          %v485 = vpop.permute.xlu0 %484
          %488 = vset.pattern.permute.xlu0 0
          %489 = vperm.xlu0 %488, %v459
          %v490 = vpop.permute.xlu0 %489
          %vm492 = vcmask 64512
          %v494 = vsel %vm492, %v455, 0
          %vm496 = vcmask 1043456
          %v498 = vsel %vm496, %v481, 0
          %500 = vmatprep.subr.bf16.mxu0 0
          %501 = vmatpush1.bf16.msra.mxu0 %v498
          %502 = vmatprep.subr.bf16.mxu0 0
          %503 = vmatpush1.bf16.msra.mxu0 0
          %504 = vmatprep.subr.bf16.mxu0 0
          %505 = vmatpush1.bf16.msra.mxu0 0
          %506 = vmatprep.subr.bf16.mxu0 0
          %507 = vmatpush1.bf16.msra.mxu0 0
          %508 = vmatprep.subr.bf16.mxu0 0
          %509 = vmatpush1.bf16.msra.mxu0 0
          %510 = vmatprep.subr.bf16.mxu0 0
          %511 = vmatpush1.bf16.msra.mxu0 0
          %512 = vmatprep.subr.bf16.mxu0 0
          %513 = vmatpush1.bf16.msra.mxu0 0
          %514 = vmatprep.subr.bf16.mxu0 0
          %515 = vmatpush1.bf16.msra.mxu0 0
          %516 = vmatprep.subr.bf16.mxu0 0
          %517 = vmatpush1.bf16.msra.mxu0 0
          %518 = vmatprep.subr.bf16.mxu0 0
          %519 = vmatpush1.bf16.msra.mxu0 0
          %520 = vmatprep.subr.bf16.mxu0 0
          %521 = vmatpush1.bf16.msra.mxu0 0
          %522 = vmatprep.subr.bf16.mxu0 0
          %523 = vmatpush1.bf16.msra.mxu0 0
          %524 = vmatprep.subr.bf16.mxu0 0
          %525 = vmatpush1.bf16.msra.mxu0 0
          %526 = vmatprep.subr.bf16.mxu0 0
          %527 = vmatpush1.bf16.msra.mxu0 0
          %528 = vmatprep.subr.bf16.mxu0 0
          %529 = vmatpush1.bf16.msra.mxu0 0
          %530 = vmatprep.subr.bf16.mxu0 0
          %531 = vmatpush1.bf16.msra.mxu0 0
          %532 = vmatprep.mubr.bf16.mxu0 0
          %533 = vmatmul.mubr.bf16.gmra.mrb[0].mxu0 %v494
          %v534 = vpop.f32.mrb[0].mxu0
          %v535 = vadd.f32 %v485, %v534
          %v536 = vpop.f32.mrb[0].mxu0
          %v537 = vpop.f32.mrb[0].mxu0
          %v538 = vadd.f32 %v490, %v537
          %v539 = vpop.f32.mrb[0].mxu0
          %540 = vdwg.mxu0
          %v541 = vmul.f32 %v535, 0.01
          %v542 = vmul.f32 %v538, 0.01
          %v543 = vmax.f32 %v535, %v541
          %v544 = vmax.f32 %v538, %v542
          %v545 = vpack.c.bf16 %v544, %v543
          %547 = vset.pattern.permute.xlu0 0
          %548 = vperm.xlu0 %547, %v460
          %v549 = vpop.permute.xlu0 %548
          %v552 = vsel %vm475, %v457, 0
          %554 = vmatprep.subr.bf16.mxu0 0
          %555 = vmatpush1.bf16.msra.mxu0 %v545
          %556 = vmatprep.subr.bf16.mxu0 0
          %557 = vmatpush1.bf16.msra.mxu0 0
          %558 = vmatprep.subr.bf16.mxu0 0
          %559 = vmatpush1.bf16.msra.mxu0 0
          %560 = vmatprep.subr.bf16.mxu0 0
          %561 = vmatpush1.bf16.msra.mxu0 0
          %562 = vmatprep.subr.bf16.mxu0 0
          %563 = vmatpush1.bf16.msra.mxu0 0
          %564 = vmatprep.subr.bf16.mxu0 0
          %565 = vmatpush1.bf16.msra.mxu0 0
          %566 = vmatprep.subr.bf16.mxu0 0
          %567 = vmatpush1.bf16.msra.mxu0 0
          %568 = vmatprep.subr.bf16.mxu0 0
          %569 = vmatpush1.bf16.msra.mxu0 0
          %570 = vmatprep.subr.bf16.mxu0 0
          %571 = vmatpush1.bf16.msra.mxu0 0
          %572 = vmatprep.subr.bf16.mxu0 0
          %573 = vmatpush1.bf16.msra.mxu0 0
          %574 = vmatprep.subr.bf16.mxu0 0
          %575 = vmatpush1.bf16.msra.mxu0 0
          %576 = vmatprep.subr.bf16.mxu0 0
          %577 = vmatpush1.bf16.msra.mxu0 0
          %578 = vmatprep.subr.bf16.mxu0 0
          %579 = vmatpush1.bf16.msra.mxu0 0
          %580 = vmatprep.subr.bf16.mxu0 0
          %581 = vmatpush1.bf16.msra.mxu0 0
          %582 = vmatprep.subr.bf16.mxu0 0
          %583 = vmatpush1.bf16.msra.mxu0 0
          %584 = vmatprep.subr.bf16.mxu0 0
          %585 = vmatpush1.bf16.msra.mxu0 0
          %586 = vmatprep.mubr.bf16.mxu0 0
          %587 = vmatmul.mubr.bf16.gmra.mrb[0].mxu0 %v552
          %v588 = vpop.f32.mrb[0].mxu0
          %v589 = vadd.f32 %v549, %v588
          %v590 = vpop.f32.mrb[0].mxu0
          %v591 = vpop.f32.mrb[0].mxu0
          %v592 = vpop.f32.mrb[0].mxu0
          %593 = vdwg.mxu0
          %v594 = vmul.f32 %v589, 0.01
          %v595 = vmax.f32 %v589, %v594
          %597 = vset.pattern.permute.xlu0 0
          %598 = vperm.xlu0 %597, %v461
          %v599 = vpop.permute.xlu0 %598
          %v601 = vmul.f32 %v595, %v599
          %v602 = vrot.slane %v601, 4
          %v603 = vadd.f32 %v601, %v602
          %v604 = vrot.slane %v603, 2
          %v605 = vadd.f32 %v603, %v604
          %v606 = vrot.slane %v605, 1
          %v607 = vadd.f32 %v605, %v606
          %609 = vset.pattern.permute.xlu0 0
          %610 = vperm.xlu0 %609, %v462
          %v611 = vpop.permute.xlu0 %610
          %v613 = vlaneseq
          %v614 = vshrl.u32 %v613, 7
          %v615 = vsub.s32 0, %v614
          %v616 = vrot.slane %v611, %v615
          %v617 = vadd.f32 %v607, %v616
          %s618 = scalar_lea.vmem %s391, %s466 [#allocation3]
          %619 = vst [vmem:[%s618] sm:$0x1] %v617
        $region61: #{tpu_custom_call.1} parent=55 // loop_footer
          %s470 = sadd.s32 1, %s466
        $region62: #{tpu_custom_call.1} parent=55 // loop_footer_branch
          %465 = sbr.rel target = $region58
        $region63: #{tpu_custom_call.1} parent=55 // loop_exit
          _
        %v620 = vld [vmem:[%s391] sm:$0xff]
        %v621 = vld [vmem:[%s391 + $0x8] sm:$0xff]
        %v622 = vxor.u32 %v620, 2147483648
        %v623 = vxor.u32 %v621, 2147483648
        %v624 = vmul.f32 %v622, 1.442695
        %v625 = vpow.pop %v624
        %v626 = vmul.f32 %v623, 1.442695
        %v627 = vpow.pop %v626
        %v628 = vadd.f32 %v625, 1.0
        %v629 = vadd.f32 %v627, 1.0
        %v630 = vrcp.pop %v628
        %v631 = vmul.f32 1.0, %v630
        %v632 = vrcp.pop %v629
        %v633 = vmul.f32 1.0, %v632
        %v634 = vld [vmem:[%s414] sm:$0xff]
        %v635 = vld [vmem:[%s414 + $0x8] sm:$0xff]
        %s636 = smul.u32 %s30, 16
        %v637 = vlaneseq
        %v638 = vshrl.u32 %v637, 7
        %v639 = vadd.s32 %v638, 8
        %v640 = vstv %s636
        %v641 = vadd.s32 %v640, %v638
        %v642 = vadd.s32 %v640, %v639
        %vm643 = vcmp.eq.s32.totalorder %v641, %v464
        %vm644 = vcmp.eq.s32.totalorder %v642, %v464
        %v645 = vsel %vm643, 1.0, 0.0
        %v646 = vsel %vm644, 1.0, 0.0
        %v647 = vsub.f32 1.0, %v645
        %v648 = vsub.f32 1.0, %v646
        %v649 = vmul.f32 %v634, %v647
        %v650 = vmul.f32 %v635, %v648
        %651 = vadd.xlane.f32.xlu0 %v649
        %v652 = vpop.xlane.xlu0 %651
        %653 = vadd.xlane.f32.xlu0 %v650
        %v654 = vpop.xlane.xlu0 %653
        %v655 = vmul.f32 %v631, %v649
        %v656 = vmul.f32 %v633, %v650
        %v657 = vand.u32 2147483647, %v655
        %v658 = vand.u32 2147483647, %v656
        %659 = vadd.xlane.f32.xlu0 %v657
        %v660 = vpop.xlane.xlu0 %659
        %661 = vadd.xlane.f32.xlu0 %v658
        %v662 = vpop.xlane.xlu0 %661
        %v663 = vmax.f32 %v660, 1e-12
        %v664 = vmax.f32 %v662, 1e-12
        %v665 = vrcp.pop %v663
        %v666 = vmul.f32 %v655, %v665
        %v667 = vrcp.pop %v664
        %v668 = vmul.f32 %v656, %v667
        %v669 = vmul.f32 %v666, %v652
        %v670 = vmul.f32 %v668, %v654
        %v671 = vadd.f32 %v669, %v645
        %v672 = vadd.f32 %v670, %v646
        %v673 = vadd.f32 %v671, 1e-06
        %v674 = vadd.f32 %v672, 1e-06
        %vm675 = vcmp.lt.s32.totalorder %v464, 16
        %v676 = vsel %vm675, 1.0, 0.0
        %v677 = vmul.f32 %v673, %v676
        %v678 = vmul.f32 %v674, %v676
        %679 = vadd.xlane.f32.xlu0 %v677
        %v680 = vpop.xlane.xlu0 %679
        %681 = vadd.xlane.f32.xlu0 %v678
        %v682 = vpop.xlane.xlu0 %681
        %v683 = vrcp.pop %v680
        %v684 = vmul.f32 %v677, %v683
        %v685 = vrcp.pop %v682
        %v686 = vmul.f32 %v678, %v685
        %687 = vst [vmem:[%s391] sm:$0xff] %v684
        %688 = vst [vmem:[%s391 + $0x8] sm:$0xff] %v686
        %s689 = sand.u32 %s255, 1
        %s690 = scalar_lea.sflag [#allocation4], %s689
        %s691 = sand.u32 %s255, 1
        %s692 = smul.addr %s691, 16
        %s693 = scalar_lea.vmem [#allocation3], %s692
        // Predicated region
        $region64: #{tpu_custom_call.1} parent=55 // pred_check
          %p694 = pneg %p265
        $region65: #{tpu_custom_call.1} parent=55 // pred_check_branch
          %696 = sbr.rel (%p694) target = $region67
        $region66: #{tpu_custom_call.1} parent=55 // pred_region
          %s697 = smul.u32 2, %s30
          %s699 = ssub.s32 256, 256
          %700 = vsyncadd %s690, %s699
          %s701 = smul.addr %s29, 2
          %s702 = sadd.s32 %s697, %s701
          %s703 = smul.addr %s702, 128
          %s704 = scalar_lea.hbm %s9, %s703
          %s705 = sshll.u32 %s693, 4
          %s706 = int_to_ptr.vmem [resolvable:$true] %s705
          %711 = dma.vmem_to_hbm [thread:$0]  %s706, 256, %s704, %s690, 128, 128, 8
        $region67: #{tpu_custom_call.1} parent=55 // pred_fallthru
          _
      $region56: #{tpu_custom_call.1} parent=5 // pred_fallthru
        _
      %p712 = scmp.le.s32.totalorder 2, %s20
      // Predicated region
      $region68: #{tpu_custom_call.1} parent=5 // pred_check
        %p713 = pneg %p712
      $region69: #{tpu_custom_call.1} parent=5 // pred_check_branch
        %715 = sbr.rel (%p713) target = $region71
      $region70: #{tpu_custom_call.1} parent=5 // pred_region
        %s716 = ssub.s32 %s20, 2
        // Predicated region
        $region72: #{tpu_custom_call.1} parent=70 // pred_check
          %p717 = pneg %p271
        $region73: #{tpu_custom_call.1} parent=70 // pred_check_branch
          %719 = sbr.rel (%p717) target = $region75
        $region74: #{tpu_custom_call.1} parent=70 // pred_region
          %s720 = sand.u32 %s256, 1
          %s721 = scalar_lea.sflag [#allocation4], %s720
          %s722 = sand.u32 %s256, 1
          %s723 = smul.addr %s722, 16
          %s724 = scalar_lea.vmem [#allocation3], %s723
          %725 = dma.done %s721, 256
        $region75: #{tpu_custom_call.1} parent=70 // pred_fallthru
          _
      $region71: #{tpu_custom_call.1} parent=5 // pred_fallthru
        _
    $region6: #{tpu_custom_call.1} parent=1 // loop_footer
      %s24 = sadd.s32 1, %s20
    $region7: #{tpu_custom_call.1} parent=1 // loop_footer_branch
      %19 = sbr.rel target = $region3
    $region8: #{tpu_custom_call.1} parent=1 // loop_exit
      _
    %726 = vsyncpa [#allocation4], 1
    %s727 = scalar_lea.sflag [#allocation4], 1
    %728 = vsyncpa %s727, 1

</llo_original>
